<compile_context>
chip_gen: v7x
topology: tpu7x:2x2x1
jax: 0.10.0
libtpu: 0.0.40
codegen_flags: <defaults>
</compile_context>

<pallas_src>
import functools

import numpy as np
import jax
import jax.numpy as jnp
from jax.experimental import pallas as pl
from jax.experimental.pallas import tpu as pltpu

# ------------------------- small synthetic config --------------------------
B = 2            # batch
S = 8            # sequence length
H = 32           # hidden_size
V = 256          # vocab_size (multiple of 128 -> lane-dense logits)
NORM_EPS = 1e-5

_VMEM_BUDGET_BYTES = 40 * 1024 * 1024     # tile budget, safe on v7x (64 MiB phys)
_VMEM_LIMIT_BYTES = 48 * 1024 * 1024      # raised scoped limit (v5e/v6e default is lower)


# ------------------------------ Pallas kernels ------------------------------
def lm_head_logits_kernel(x_ref, lnw_ref, lnb_ref, w_ref,
                          logits_ref, lse_ref,
                          xn_ref, m_ref, l_ref,
                          *, norm_eps, normalize_in_kernel):
    # x_ref:      (tm, H)  f32 activation row tile        (constant across j)
    # lnw/lnb:    (1, H)   f32 LayerNorm affine           (constant)
    # w_ref:      (H, tv)  bf16 lm_head weight tile       (varies with j)
    # logits_ref: (tm, tv) f32 (normalized iff single V tile)
    # lse_ref:    (tm, 1)  f32 per-row logsumexp
    # xn_ref:     (tm, H)  bf16 scratch (normalized activations, MXU operand)
    # m_ref/l_ref:(tm, 1)  f32 scratch (online-logsumexp running max / sum)
    j = pl.program_id(1)

    @pl.when(j == 0)
    def _():
        # LayerNorm once per row tile (f32 on the VPU), cache bf16 MXU operand.
        x = x_ref[...]
        mean = jnp.mean(x, axis=-1, keepdims=True)
        xc = x - mean
        var = jnp.mean(xc * xc, axis=-1, keepdims=True)
        xn = xc * jax.lax.rsqrt(var + norm_eps) * lnw_ref[...] + lnb_ref[...]
        xn_ref[...] = xn.astype(jnp.bfloat16)
        m_ref[...] = jnp.full(m_ref.shape, -jnp.inf, m_ref.dtype)
        l_ref[...] = jnp.zeros(l_ref.shape, l_ref.dtype)

    # MXU: bf16 operands, f32 accumulation.
    logits = jnp.dot(xn_ref[...], w_ref[...], preferred_element_type=jnp.float32)

    # Online logsumexp update (f32, EUP exp).
    m_prev = m_ref[...]
    m_new = jnp.maximum(m_prev, jnp.max(logits, axis=-1, keepdims=True))
    l_ref[...] = (l_ref[...] * jnp.exp(m_prev - m_new)
                  + jnp.sum(jnp.exp(logits - m_new), axis=-1, keepdims=True))
    m_ref[...] = m_new

    if normalize_in_kernel:
        # Single V tile: the LSE is already final, emit log-probs directly.
        lse = m_new + jnp.log(l_ref[...])
        logits_ref[...] = logits - lse
        lse_ref[...] = lse
    else:
        logits_ref[...] = logits            # unnormalized; fixed up in pass 2
        @pl.when(j == pl.num_programs(1) - 1)
        def _():
            lse_ref[...] = m_ref[...] + jnp.log(l_ref[...])


def lse_subtract_kernel(logits_ref, lse_ref, out_ref):
    # Pure mem-bound pass: log_probs = logits - lse (in-place via aliasing).
    out_ref[...] = logits_ref[...] - lse_ref[...]


# ------------------------------ tile selection ------------------------------
def _round_up(a, b):
    return ((a + b - 1) // b) * b


def _choose_tm(n, max_block_rows):
    if _round_up(max(n, 1), 8) <= 8:
        return 8
    # Guarantee >= 2 row tiles so both v7x TensorCores get a "parallel" tile.
    half = _round_up((n + 1) // 2, 8)
    return max(8, min(max_block_rows, half))


def _choose_tv(v, tm, h, budget_bytes):
    def fits(tv):
        return (2 * h * tv * 2            # bf16 weight tile, double buffered
                + 2 * tm * tv * 4         # f32 logits tile, double buffered
                + 2 * tm * h * 4          # f32 activation tile, double buffered
                + tm * h * 2              # bf16 xn scratch
                + 6 * tm * 128 * 4        # m/l scratch + lse (lane padded)
                ) <= budget_bytes
    # Prefer the full vocab (single tile, in-kernel normalization), else the
    # largest lane-dense divisor that fits the VMEM budget.
    candidates = [v] + [c for c in (8192, 4096, 2048, 1024, 512, 256, 128)
                        if c < v and v % c == 0]
    for tv in candidates:
        if fits(tv):
            return tv
    return 128


# ------------------------------ wrapper (glue) ------------------------------
def _lm_head_impl(params, hidden_states, *, max_block_rows=256, block_v=None):
    """hidden_states: (B, S, H) f32 -> (B, S, V) f32 log-probs."""
    b, s, h = hidden_states.shape
    v = params['w'].shape[1]
    assert v % 128 == 0, "vocab_size must be a multiple of 128"
    n = b * s

    x = hidden_states.reshape(n, h).astype(jnp.float32)

    tm = _choose_tm(n, max_block_rows)
    n_pad = _round_up(n, tm)
    if n_pad != n:
        # Padded rows are all-zero: LayerNorm yields ln_b (finite, var=0 ->
        # rsqrt(eps)), so exp/log stay finite; padded rows are sliced away below.
        x = jnp.pad(x, ((0, n_pad - n), (0, 0)))

    tv = block_v if block_v is not None else _choose_tv(v, tm, h, _VMEM_BUDGET_BYTES)
    assert v % tv == 0 and (tv % 128 == 0 or tv == v)
    n_row_tiles = n_pad // tm
    n_v_tiles = v // tv
    single_v_tile = n_v_tiles == 1

    w = params['w']
    if w.dtype != jnp.bfloat16:
        # Fallback only: weights should be stored bf16 (see init_params) so this
        # extra HBM pass over the full weight never runs in the hot path.
        w = w.astype(jnp.bfloat16)

    kernel = functools.partial(lm_head_logits_kernel, norm_eps=NORM_EPS,
                               normalize_in_kernel=single_v_tile)

    cost1 = pl.CostEstimate(
        flops=2 * n_pad * h * v,
        transcendentals=n_pad * v,
        bytes_accessed=(n_pad * h * 4 + n_row_tiles * h * v * 2
                        + n_pad * v * 4 + n_pad * 4),
    )

    logits, lse = pl.pallas_call(
        kernel,
        out_shape=(jax.ShapeDtypeStruct((n_pad, v), jnp.float32),
                   jax.ShapeDtypeStruct((n_pad, 1), jnp.float32)),
        grid_spec=pltpu.PrefetchScalarGridSpec(
            num_scalar_prefetch=0,
            grid=(n_row_tiles, n_v_tiles),          # V innermost (reduction-ish)
            in_specs=[
                pl.BlockSpec((tm, h), lambda i, j: (i, 0)),   # activations
                pl.BlockSpec((1, h), lambda i, j: (0, 0)),    # LN weight
                pl.BlockSpec((1, h), lambda i, j: (0, 0)),    # LN bias
                pl.BlockSpec((h, tv), lambda i, j: (0, j)),   # weight V-tile
            ],
            out_specs=[
                pl.BlockSpec((tm, tv), lambda i, j: (i, j)),  # logits / log-probs
                pl.BlockSpec((tm, 1), lambda i, j: (i, 0)),   # per-row LSE
            ],
            scratch_shapes=[
                pltpu.VMEM((tm, h), jnp.bfloat16),   # normalized activations
                pltpu.VMEM((tm, 1), jnp.float32),    # running max
                pltpu.VMEM((tm, 1), jnp.float32),    # running sum
            ],
        ),
        compiler_params=pltpu.CompilerParams(
            dimension_semantics=("parallel", "arbitrary"),
            vmem_limit_bytes=_VMEM_LIMIT_BYTES),
        cost_estimate=cost1,
    )(x, params['ln_w'], params['ln_b'], w)

    if single_v_tile:
        out = logits                                  # already normalized
    else:
        cost2 = pl.CostEstimate(flops=n_pad * v, transcendentals=0,
                                bytes_accessed=2 * n_pad * v * 4 + n_pad * 4)
        out = pl.pallas_call(
            lse_subtract_kernel,
            out_shape=jax.ShapeDtypeStruct((n_pad, v), jnp.float32),
            grid_spec=pltpu.PrefetchScalarGridSpec(
                num_scalar_prefetch=0,
                grid=(n_row_tiles, n_v_tiles),
                in_specs=[
                    pl.BlockSpec((tm, tv), lambda i, j: (i, j)),
                    pl.BlockSpec((tm, 1), lambda i, j: (i, 0)),
                ],
                out_specs=pl.BlockSpec((tm, tv), lambda i, j: (i, j)),
            ),
            compiler_params=pltpu.CompilerParams(
                dimension_semantics=("parallel", "parallel"),
                vmem_limit_bytes=_VMEM_LIMIT_BYTES),
            cost_estimate=cost2,
            input_output_aliases={0: 0},              # rewrite logits in place
        )(logits, lse)

    return out[:n].reshape(b, s, v)


lm_head = jax.jit(_lm_head_impl, static_argnames=('max_block_rows', 'block_v'))


# --------------------------- pure-JAX references -----------------------------
def _layernorm_ref(params, hidden_states):
    mean = jnp.mean(hidden_states, axis=-1, keepdims=True)
    var = jnp.mean(jnp.square(hidden_states - mean), axis=-1, keepdims=True)
    xn = (hidden_states - mean) * jax.lax.rsqrt(var + NORM_EPS)
    return xn * params['ln_w'][0] + params['ln_b'][0]


def lm_head_ref_f32(params, hidden_states):
    xn = _layernorm_ref(params, hidden_states)
    logits = jnp.einsum('bsh,hv->bsv', xn, params['w'].astype(jnp.float32))
    return jax.nn.log_softmax(logits, axis=-1)


def lm_head_ref_bf16(params, hidden_states):
    # Precision-matched reference (bf16 MXU operands, f32 accumulation).
    xn = _layernorm_ref(params, hidden_states)
    logits = jnp.einsum('bsh,hv->bsv', xn.astype(jnp.bfloat16),
                        params['w'].astype(jnp.bfloat16),
                        preferred_element_type=jnp.float32)
    return jax.nn.log_softmax(logits, axis=-1)


# ----------------------- deterministic parameter init -----------------------
def init_params(key):
    k_w, k_lw, k_lb = jax.random.split(key, 3)
    return {
        'ln_w': (1.0 + 0.1 * jax.random.normal(k_lw, (1, H))).astype(jnp.float32),
        'ln_b': (0.1 * jax.random.normal(k_lb, (1, H))).astype(jnp.float32),
        # lm_head weight stored (in_features, out_features) and in bf16 ONCE, so
        # the hot path never re-streams the f32 weight through HBM for a cast.
        'w': (jax.random.normal(k_w, (H, V)) / np.sqrt(H)).astype(jnp.bfloat16),
    }


if __name__ == "__main__":
    key = jax.random.PRNGKey(0)
    kp, kh = jax.random.split(key)
    params = init_params(kp)

    hidden_states = jax.random.normal(kh, (B, S, H), jnp.float32)

    ref32 = lm_head_ref_f32(params, hidden_states)
    refbf = lm_head_ref_bf16(params, hidden_states)

    # 1) auto tiling: single V tile at this toy size -> in-kernel normalization
    out = jax.block_until_ready(lm_head(params, hidden_states))
    # 2) forced V tiling: 2 vocab tiles -> online logsumexp + LSE-subtract pass
    out_tiled = jax.block_until_ready(lm_head(params, hidden_states, block_v=128))

    for o in (out, out_tiled):
        assert o.shape == (B, S, V)
        assert bool(jnp.all(jnp.isfinite(o)))
        # precision-matched reference -> tight tolerance
        err_bf = float(jnp.max(jnp.abs(o - refbf)))
        assert err_bf < 5e-3, f"max abs err vs bf16-matched reference: {err_bf}"
        # full-f32 reference -> loose tolerance (bf16 MXU operands)
        err_32 = float(jnp.max(jnp.abs(o - ref32)))
        assert err_32 < 0.1, f"max abs err vs f32 reference: {err_32}"
        # rows of exp(log_probs) must sum to ~1
        row_sum_err = float(jnp.max(jnp.abs(jnp.sum(jnp.exp(o), axis=-1) - 1.0)))
        assert row_sum_err < 1e-2, f"log_softmax not normalized: {row_sum_err}"

    print("KERNEL_OK")
</pallas_src>

<mosaic_0001>
module attributes {stable_mosaic.version = 11 : i64} {
  func.func @lm_head_logits_kernel(%arg0: i32, %arg1: i32, %arg2: memref<8x32xf32, #tpu.memory_space<vmem>>, %arg3: memref<1x32xf32, #tpu.memory_space<vmem>>, %arg4: memref<1x32xf32, #tpu.memory_space<vmem>>, %arg5: memref<32x256xbf16, #tpu.memory_space<vmem>>, %arg6: memref<8x256xf32, #tpu.memory_space<vmem>>, %arg7: memref<8x1xf32, #tpu.memory_space<vmem>>, %arg8: memref<8x32xbf16, #tpu.memory_space<vmem>>, %arg9: memref<8x1xf32, #tpu.memory_space<vmem>>, %arg10: memref<8x1xf32, #tpu.memory_space<vmem>>) attributes {dimension_semantics = [#tpu.dimension_semantics<parallel>, #tpu.dimension_semantics<arbitrary>], iteration_bounds = array<i64: 2, 1>, scalar_prefetch = 0 : i64, scratch_operands = 3 : i64, tpu.core_type = #tpu.core_type<tc>, window_params = [{transform_indices = @transform_0, window_bounds = array<i64: 8, 32>}, {pipeline_mode = #tpu.pipeline_mode<synchronous>, transform_indices = @transform_1, window_bounds = array<i64: 1, 32>}, {pipeline_mode = #tpu.pipeline_mode<synchronous>, transform_indices = @transform_2, window_bounds = array<i64: 1, 32>}, {transform_indices = @transform_3, window_bounds = array<i64: 32, 256>}, {transform_indices = @transform_4, window_bounds = array<i64: 8, 256>}, {transform_indices = @transform_5, window_bounds = array<i64: 8, 1>}]} {
    %c0_i32 = arith.constant 0 : i32
    %0 = arith.cmpi eq, %arg1, %c0_i32 : i32
    %1 = arith.extui %0 : i1 to i32
    %c0_i32_0 = arith.constant 0 : i32
    %2 = arith.cmpi ne, %1, %c0_i32_0 : i32
    scf.if %2 {
      %c0_20 = arith.constant 0 : index
      %c0_21 = arith.constant 0 : index
      %29 = vector.load %arg2[%c0_20, %c0_21] : memref<8x32xf32, #tpu.memory_space<vmem>>, vector<8x32xf32>
      %cst_22 = arith.constant dense<0.000000e+00> : vector<8xf32>
      %30 = vector.multi_reduction <add>, %29, %cst_22 [1] : vector<8x32xf32> to vector<8xf32>
      %31 = vector.shape_cast %30 : vector<8xf32> to vector<8x1xf32>
      %cst_23 = arith.constant 3.200000e+01 : f32
      %32 = vector.broadcast %cst_23 : f32 to vector<8x1xf32>
      %33 = arith.divf %31, %32 : vector<8x1xf32>
      %34 = vector.broadcast %33 : vector<8x1xf32> to vector<8x32xf32>
      %35 = arith.subf %29, %34 : vector<8x32xf32>
      %36 = arith.mulf %35, %35 : vector<8x32xf32>
      %cst_24 = arith.constant dense<0.000000e+00> : vector<8xf32>
      %37 = vector.multi_reduction <add>, %36, %cst_24 [1] : vector<8x32xf32> to vector<8xf32>
      %38 = vector.shape_cast %37 : vector<8xf32> to vector<8x1xf32>
      %cst_25 = arith.constant 3.200000e+01 : f32
      %39 = vector.broadcast %cst_25 : f32 to vector<8x1xf32>
      %40 = arith.divf %38, %39 : vector<8x1xf32>
      %cst_26 = arith.constant 9.99999974E-6 : f32
      %41 = vector.broadcast %cst_26 : f32 to vector<8x1xf32>
      %42 = arith.addf %40, %41 : vector<8x1xf32>
      %43 = math.rsqrt %42 : vector<8x1xf32>
      %44 = vector.broadcast %43 : vector<8x1xf32> to vector<8x32xf32>
      %45 = arith.mulf %35, %44 : vector<8x32xf32>
      %c0_27 = arith.constant 0 : index
      %c0_28 = arith.constant 0 : index
      %46 = vector.load %arg3[%c0_27, %c0_28] : memref<1x32xf32, #tpu.memory_space<vmem>>, vector<1x32xf32>
      %47 = vector.broadcast %46 : vector<1x32xf32> to vector<8x32xf32>
      %48 = arith.mulf %45, %47 : vector<8x32xf32>
      %c0_29 = arith.constant 0 : index
      %c0_30 = arith.constant 0 : index
      %49 = vector.load %arg4[%c0_29, %c0_30] : memref<1x32xf32, #tpu.memory_space<vmem>>, vector<1x32xf32>
      %50 = vector.broadcast %49 : vector<1x32xf32> to vector<8x32xf32>
      %51 = arith.addf %48, %50 : vector<8x32xf32>
      %52 = arith.truncf %51 : vector<8x32xf32> to vector<8x32xbf16>
      %c0_31 = arith.constant 0 : index
      %c0_32 = arith.constant 0 : index
      %53 = vector.load %arg8[%c0_31, %c0_32] : memref<8x32xbf16, #tpu.memory_space<vmem>>, vector<8x32xbf16>
      tpu.vector_store %arg8[%c0_31, %c0_32], %52 {strides = array<i32>} : memref<8x32xbf16, #tpu.memory_space<vmem>>, vector<8x32xbf16>,
      %cst_33 = arith.constant 0xFF800000 : f32
      %54 = vector.broadcast %cst_33 : f32 to vector<8x1xf32>
      %c0_34 = arith.constant 0 : index
      %c0_35 = arith.constant 0 : index
      %55 = vector.load %arg9[%c0_34, %c0_35] : memref<8x1xf32, #tpu.memory_space<vmem>>, vector<8x1xf32>
      tpu.vector_store %arg9[%c0_34, %c0_35], %54 {strides = array<i32>} : memref<8x1xf32, #tpu.memory_space<vmem>>, vector<8x1xf32>,
      %cst_36 = arith.constant 0.000000e+00 : f32
      %56 = vector.broadcast %cst_36 : f32 to vector<8x1xf32>
      %c0_37 = arith.constant 0 : index
      %c0_38 = arith.constant 0 : index
      %57 = vector.load %arg10[%c0_37, %c0_38] : memref<8x1xf32, #tpu.memory_space<vmem>>, vector<8x1xf32>
      tpu.vector_store %arg10[%c0_37, %c0_38], %56 {strides = array<i32>} : memref<8x1xf32, #tpu.memory_space<vmem>>, vector<8x1xf32>,
    } else {
    }
    %c0 = arith.constant 0 : index
    %c0_1 = arith.constant 0 : index
    %3 = vector.load %arg8[%c0, %c0_1] : memref<8x32xbf16, #tpu.memory_space<vmem>>, vector<8x32xbf16>
    %c0_2 = arith.constant 0 : index
    %c0_3 = arith.constant 0 : index
    %4 = vector.load %arg5[%c0_2, %c0_3] : memref<32x256xbf16, #tpu.memory_space<vmem>>, vector<32x256xbf16>
    %cst = arith.constant dense<0.000000e+00> : vector<8x256xf32>
    %5 = tpu.matmul %3, %4, %cst {dimension_numbers = #tpu.dot_dimension_numbers<[1], [0], [0], [1], [0, 0, 1, 1], [], []>} : vector<8x32xbf16>, vector<32x256xbf16>, vector<8x256xf32> -> vector<8x256xf32>
    %c0_4 = arith.constant 0 : index
    %c0_5 = arith.constant 0 : index
    %6 = vector.load %arg9[%c0_4, %c0_5] : memref<8x1xf32, #tpu.memory_space<vmem>>, vector<8x1xf32>
    %cst_6 = arith.constant dense<0xFF800000> : vector<8xf32>
    %7 = vector.multi_reduction <maximumf>, %5, %cst_6 [1] : vector<8x256xf32> to vector<8xf32>
    %8 = vector.shape_cast %7 : vector<8xf32> to vector<8x1xf32>
    %9 = arith.maximumf %6, %8 : vector<8x1xf32>
    %c0_7 = arith.constant 0 : index
    %c0_8 = arith.constant 0 : index
    %10 = vector.load %arg10[%c0_7, %c0_8] : memref<8x1xf32, #tpu.memory_space<vmem>>, vector<8x1xf32>
    %11 = arith.subf %6, %9 : vector<8x1xf32>
    %12 = math.exp %11 : vector<8x1xf32>
    %13 = arith.mulf %10, %12 : vector<8x1xf32>
    %14 = vector.broadcast %9 : vector<8x1xf32> to vector<8x256xf32>
    %15 = arith.subf %5, %14 : vector<8x256xf32>
    %16 = math.exp %15 : vector<8x256xf32>
    %cst_9 = arith.constant dense<0.000000e+00> : vector<8xf32>
    %17 = vector.multi_reduction <add>, %16, %cst_9 [1] : vector<8x256xf32> to vector<8xf32>
    %18 = vector.shape_cast %17 : vector<8xf32> to vector<8x1xf32>
    %19 = arith.addf %13, %18 : vector<8x1xf32>
    %c0_10 = arith.constant 0 : index
    %c0_11 = arith.constant 0 : index
    %20 = vector.load %arg10[%c0_10, %c0_11] : memref<8x1xf32, #tpu.memory_space<vmem>>, vector<8x1xf32>
    tpu.vector_store %arg10[%c0_10, %c0_11], %19 {strides = array<i32>} : memref<8x1xf32, #tpu.memory_space<vmem>>, vector<8x1xf32>,
    %c0_12 = arith.constant 0 : index
    %c0_13 = arith.constant 0 : index
    %21 = vector.load %arg9[%c0_12, %c0_13] : memref<8x1xf32, #tpu.memory_space<vmem>>, vector<8x1xf32>
    tpu.vector_store %arg9[%c0_12, %c0_13], %9 {strides = array<i32>} : memref<8x1xf32, #tpu.memory_space<vmem>>, vector<8x1xf32>,
    %c0_14 = arith.constant 0 : index
    %c0_15 = arith.constant 0 : index
    %22 = vector.load %arg10[%c0_14, %c0_15] : memref<8x1xf32, #tpu.memory_space<vmem>>, vector<8x1xf32>
    %23 = math.log %22 : vector<8x1xf32>
    %24 = arith.addf %9, %23 : vector<8x1xf32>
    %25 = vector.broadcast %24 : vector<8x1xf32> to vector<8x256xf32>
    %26 = arith.subf %5, %25 : vector<8x256xf32>
    %c0_16 = arith.constant 0 : index
    %c0_17 = arith.constant 0 : index
    %27 = vector.load %arg6[%c0_16, %c0_17] : memref<8x256xf32, #tpu.memory_space<vmem>>, vector<8x256xf32>
    tpu.vector_store %arg6[%c0_16, %c0_17], %26 {strides = array<i32>} : memref<8x256xf32, #tpu.memory_space<vmem>>, vector<8x256xf32>,
    %c0_18 = arith.constant 0 : index
    %c0_19 = arith.constant 0 : index
    %28 = vector.load %arg7[%c0_18, %c0_19] : memref<8x1xf32, #tpu.memory_space<vmem>>, vector<8x1xf32>
    tpu.vector_store %arg7[%c0_18, %c0_19], %24 {strides = array<i32>} : memref<8x1xf32, #tpu.memory_space<vmem>>, vector<8x1xf32>,
    return
  }
  func.func @transform_0(%arg0: i32, %arg1: i32) -> (i32, i32) {
    %c0_i32 = arith.constant 0 : i32
    %c0_i32_0 = arith.constant 0 : i32
    return %arg0, %c0_i32 : i32, i32
  }
  func.func @transform_1(%arg0: i32, %arg1: i32) -> (i32, i32) {
    %c0_i32 = arith.constant 0 : i32
    %c0_i32_0 = arith.constant 0 : i32
    %c0_i32_1 = arith.constant 0 : i32
    return %c0_i32, %c0_i32_0 : i32, i32
  }
  func.func @transform_2(%arg0: i32, %arg1: i32) -> (i32, i32) {
    %c0_i32 = arith.constant 0 : i32
    %c0_i32_0 = arith.constant 0 : i32
    %c0_i32_1 = arith.constant 0 : i32
    return %c0_i32, %c0_i32_0 : i32, i32
  }
  func.func @transform_3(%arg0: i32, %arg1: i32) -> (i32, i32) {
    %c0_i32 = arith.constant 0 : i32
    %c0_i32_0 = arith.constant 0 : i32
    return %c0_i32, %arg1 : i32, i32
  }
  func.func @transform_4(%arg0: i32, %arg1: i32) -> (i32, i32) {
    %c0_i32 = arith.constant 0 : i32
    return %arg0, %arg1 : i32, i32
  }
  func.func @transform_5(%arg0: i32, %arg1: i32) -> (i32, i32) {
    %c0_i32 = arith.constant 0 : i32
    %c0_i32_0 = arith.constant 0 : i32
    return %arg0, %c0_i32 : i32, i32
  }
}

</mosaic_0001>

<llo_original>
// kernel: _lm_head_impl.1
$region0: #{_lm_head_impl.1}
  #allocation0 [shape = 'u32[]', space=smem, size = 0x4, offset = 0x4, fixed_abs, tag = 'smem constant byte address 0x4 - core index']
  #allocation1 [shape = 'u32[144,128]{1,0:T(1,128)}', space=vmem, size = 0x12000, scoped, tag = 'internal scratch']
  #allocation2 [shape = 'bf16[8,32]{1,0:T(8,128)(2,1)}', space=vmem, size = 0x800, scoped, tag = 'scratch operand']
  #allocation3 [shape = 'f32[8,1]{1,0:T(8,128)}', space=vmem, size = 0x1000, scoped, tag = 'scratch operand']
  #allocation4 [shape = 'f32[8,1]{1,0:T(8,128)}', space=vmem, size = 0x1000, scoped, tag = 'scratch operand']
  %s0 = inlined_call_operand.hbm [shape: f32[16,32], index: 0, kind: input, shape index: {}]
  %s1 = inlined_call_operand.vmem [shape: f32[1,32], index: 1, kind: input, shape index: {}]
  %s2 = inlined_call_operand.vmem [shape: f32[1,32], index: 2, kind: input, shape index: {}]
  %s3 = inlined_call_operand.hbm [shape: bf16[32,256], index: 3, kind: input, shape index: {}]
  %s4 = inlined_call_operand.hbm [shape: f32[16,256], index: 4, kind: output, shape index: {0}]
  %s5 = inlined_call_operand.hbm [shape: f32[16,1], index: 5, kind: output, shape index: {1}]
  %6 = xla_tuple %s4, %s5
  %s7 = sld [smem:[#allocation0]]
  $region69: #{_lm_head_impl.1} parent=0
    _
  %s9 = ssub.s32 1, %s7
  %s10 = scalar_select 0, %s9, %s7
  $region1: #{_lm_head_impl.1} parent=0
    #allocation5 [shape = 'u8[8192]{0}', space=vmem, size = 0x2000, scoped, tag = 'input window, operand 0']
    #allocation6 [shape = 's32[2]{0}', space=sflag, size = 0x8, scoped, tag = 'scoped memory for _lm_head_impl.1']
    #allocation7 [shape = 's32[2]{0}', space=sflag, size = 0x8, scoped, tag = 'scoped memory for _lm_head_impl.1']
    #allocation8 [shape = 'u8[16384]{0}', space=vmem, size = 0x4000, scoped, tag = 'input window, operand 3, single buffered']
    #allocation9 [shape = 's32[1]{0}', space=sflag, size = 0x4, scoped, tag = 'scoped memory for _lm_head_impl.1']
    #allocation10 [shape = 'u8[16384]{0}', space=vmem, size = 0x4000, scoped, tag = 'output window, operand 0']
    #allocation11 [shape = 'u8[8192]{0}', space=vmem, size = 0x2000, scoped, tag = 'output window, operand 1']
    #allocation12 [shape = 's32[2]{0}', space=sflag, size = 0x8, scoped, tag = 'scoped memory for _lm_head_impl.1']
    %11 = vsyncpa [#allocation6], 0
    %s12 = scalar_lea.sflag [#allocation6], 1
    %13 = vsyncpa %s12, 0
    %14 = vsyncpa [#allocation9], 0
    %15 = vsyncpa [#allocation7], 0
    %s16 = scalar_lea.sflag [#allocation7], 1
    %17 = vsyncpa %s16, 0
    %18 = vsyncpa [#allocation12], 0
    %s19 = scalar_lea.sflag [#allocation12], 1
    %20 = vsyncpa %s19, 0
    loop: start=0, step=1, limit=4
    $region2: #{_lm_head_impl.1} parent=1 // loop_pre_header
      _
    $region3: #{_lm_head_impl.1} parent=1 // loop_header
      %s22 = sphi 0, %s26
      %p23 = scmp.ge.s32.totalorder %s22, 4
      %s29 = sphi 0, %s41
      %s30 = sphi 0, %s37
      %s31 = sphi 0, %s29
      %s32 = sphi 0, %s30
      %s33 = sphi 0, %s31
      %s34 = sphi 0, %s32
      %s44 = sphi 0, %s46
      %s47 = sphi 0, %s44
      %s48 = sphi 0, %s47
      %s64 = sphi 0, %s48
      %s68 = sphi 0, %s68
      %s70 = sphi 0, %s68
      %s71 = sphi 0, %s70
      %s85 = sphi 0, %s71
      %s89 = sphi 0, %s89
      %s91 = sphi 0, %s89
      %s92 = sphi 0, %s91
      %s106 = sphi 0, %s92
      %s112 = sphi 0, %s114
      %s115 = sphi 0, %s112
      %s116 = sphi 0, %s115
      %s132 = sphi 0, %s116
      %s140 = sphi 0, %s142
      %s143 = sphi 0, %s140
      %s144 = sphi 0, %s143
      %s160 = sphi 0, %s144
      %s166 = sphi 0, %s168
      %s169 = sphi 0, %s166
      %s170 = sphi 0, %s169
      %s186 = sphi 0, %s170
    $region4: #{_lm_head_impl.1} parent=1 // loop_header_branch
      %25 = sbr.rel (%p23) target = $region8
    $region5: #{_lm_head_impl.1} parent=1 // loop_body
      %s27 = ssub.s32 %s22, 1
      %s28 = ssub.s32 %s22, 2
      %s35 = sadd.s32 1, %s30
      %p36 = scmp.ge.s32.totalorder %s35, 1
      %s37 = scalar_select %p36, 0, %s35
      %s38 = sadd.s32 1, %s29
      %s39 = scalar_select %p36, %s38, %s29
      %p40 = scmp.ge.s32.totalorder %s39, 2
      %s41 = scalar_select %p40, 0, %s39
      %s42 = ssub.s32 %s29, %s41
      %p43 = scmp.eq.s32.totalorder %s42, 0
      %s45 = sadd.s32 %s44, 1
      %s46 = scalar_select %p43, %s44, %s45
      %p49 = pneg %p43
      %p50 = scmp.eq.s32.totalorder %s22, 1
      %p51 = por %p49, %p50
      %p52 = scmp.ne.s32.totalorder %s44, %s47
      %p53 = scmp.eq.s32.totalorder %s22, 0
      %p54 = por %p52, %p53
      %p55 = scmp.ne.s32.totalorder %s44, %s47
      %p56 = scmp.eq.s32.totalorder %s27, 1
      %p57 = por %p55, %p56
      %p58 = scmp.ne.s32.totalorder %s47, %s48
      %p59 = scmp.eq.s32.totalorder %s27, 0
      %p60 = por %p58, %p59
      %p61 = scmp.ne.s32.totalorder %s47, %s48
      %p62 = scmp.eq.s32.totalorder %s28, 1
      %p63 = por %p61, %p62
      %p65 = scmp.ne.s32.totalorder %s48, %s64
      %p66 = scmp.eq.s32.totalorder %s28, 0
      %p67 = por %p65, %p66
      %s69 = sadd.s32 %s68, 1
      %p72 = scmp.eq.s32.totalorder %s22, 1
      %p73 = scmp.ne.s32.totalorder %s68, %s70
      %p74 = scmp.eq.s32.totalorder %s22, 0
      %p75 = por %p73, %p74
      %p76 = scmp.ne.s32.totalorder %s68, %s70
      %p77 = scmp.eq.s32.totalorder %s27, 1
      %p78 = por %p76, %p77
      %p79 = scmp.ne.s32.totalorder %s70, %s71
      %p80 = scmp.eq.s32.totalorder %s27, 0
      %p81 = por %p79, %p80
      %p82 = scmp.ne.s32.totalorder %s70, %s71
      %p83 = scmp.eq.s32.totalorder %s28, 1
      %p84 = por %p82, %p83
      %p86 = scmp.ne.s32.totalorder %s71, %s85
      %p87 = scmp.eq.s32.totalorder %s28, 0
      %p88 = por %p86, %p87
      %s90 = sadd.s32 %s89, 1
      %p93 = scmp.eq.s32.totalorder %s22, 1
      %p94 = scmp.ne.s32.totalorder %s89, %s91
      %p95 = scmp.eq.s32.totalorder %s22, 0
      %p96 = por %p94, %p95
      %p97 = scmp.ne.s32.totalorder %s89, %s91
      %p98 = scmp.eq.s32.totalorder %s27, 1
      %p99 = por %p97, %p98
      %p100 = scmp.ne.s32.totalorder %s91, %s92
      %p101 = scmp.eq.s32.totalorder %s27, 0
      %p102 = por %p100, %p101
      %p103 = scmp.ne.s32.totalorder %s91, %s92
      %p104 = scmp.eq.s32.totalorder %s28, 1
      %p105 = por %p103, %p104
      %p107 = scmp.ne.s32.totalorder %s92, %s106
      %p108 = scmp.eq.s32.totalorder %s28, 0
      %p109 = por %p107, %p108
      %s110 = ssub.s32 %s30, %s37
      %p111 = scmp.eq.s32.totalorder %s110, 0
      %s113 = sadd.s32 %s112, 1
      %s114 = scalar_select %p111, %s112, %s113
      %p117 = pneg %p111
      %p118 = scmp.eq.s32.totalorder %s22, 1
      %p119 = por %p117, %p118
      %p120 = scmp.ne.s32.totalorder %s112, %s115
      %p121 = scmp.eq.s32.totalorder %s22, 0
      %p122 = por %p120, %p121
      %p123 = scmp.ne.s32.totalorder %s112, %s115
      %p124 = scmp.eq.s32.totalorder %s27, 1
      %p125 = por %p123, %p124
      %p126 = scmp.ne.s32.totalorder %s115, %s116
      %p127 = scmp.eq.s32.totalorder %s27, 0
      %p128 = por %p126, %p127
      %p129 = scmp.ne.s32.totalorder %s115, %s116
      %p130 = scmp.eq.s32.totalorder %s28, 1
      %p131 = por %p129, %p130
      %p133 = scmp.ne.s32.totalorder %s116, %s132
      %p134 = scmp.eq.s32.totalorder %s28, 0
      %p135 = por %p133, %p134
      %s136 = ssub.s32 %s29, %s41
      %s137 = ssub.s32 %s30, %s37
      %s138 = sor.u32 %s136, %s137
      %p139 = scmp.eq.s32.totalorder %s138, 0
      %s141 = sadd.s32 %s140, 1
      %s142 = scalar_select %p139, %s140, %s141
      %p145 = pneg %p139
      %p146 = scmp.eq.s32.totalorder %s22, 1
      %p147 = por %p145, %p146
      %p148 = scmp.ne.s32.totalorder %s140, %s143
      %p149 = scmp.eq.s32.totalorder %s22, 0
      %p150 = por %p148, %p149
      %p151 = scmp.ne.s32.totalorder %s140, %s143
      %p152 = scmp.eq.s32.totalorder %s27, 1
      %p153 = por %p151, %p152
      %p154 = scmp.ne.s32.totalorder %s143, %s144
      %p155 = scmp.eq.s32.totalorder %s27, 0
      %p156 = por %p154, %p155
      %p157 = scmp.ne.s32.totalorder %s143, %s144
      %p158 = scmp.eq.s32.totalorder %s28, 1
      %p159 = por %p157, %p158
      %p161 = scmp.ne.s32.totalorder %s144, %s160
      %p162 = scmp.eq.s32.totalorder %s28, 0
      %p163 = por %p161, %p162
      %s164 = ssub.s32 %s29, %s41
      %p165 = scmp.eq.s32.totalorder %s164, 0
      %s167 = sadd.s32 %s166, 1
      %s168 = scalar_select %p165, %s166, %s167
      %p171 = pneg %p165
      %p172 = scmp.eq.s32.totalorder %s22, 1
      %p173 = por %p171, %p172
      %p174 = scmp.ne.s32.totalorder %s166, %s169
      %p175 = scmp.eq.s32.totalorder %s22, 0
      %p176 = por %p174, %p175
      %p177 = scmp.ne.s32.totalorder %s166, %s169
      %p178 = scmp.eq.s32.totalorder %s27, 1
      %p179 = por %p177, %p178
      %p180 = scmp.ne.s32.totalorder %s169, %s170
      %p181 = scmp.eq.s32.totalorder %s27, 0
      %p182 = por %p180, %p181
      %p183 = scmp.ne.s32.totalorder %s169, %s170
      %p184 = scmp.eq.s32.totalorder %s28, 1
      %p185 = por %p183, %p184
      %p187 = scmp.ne.s32.totalorder %s170, %s186
      %p188 = scmp.eq.s32.totalorder %s28, 0
      %p189 = por %p187, %p188
      %p190 = scmp.le.s32.totalorder 1, %s22
      %p191 = scmp.lt.s32.totalorder %s22, 3
      %p192 = pnand %p190, %p191
      %p193 = pneg %p192
      // Predicated region
      $region9: #{_lm_head_impl.1} parent=5 // pred_check
        _
      $region10: #{_lm_head_impl.1} parent=5 // pred_check_branch
        %195 = sbr.rel (%p192) target = $region12
      $region11: #{_lm_head_impl.1} parent=5 // pred_region
        %s196 = ssub.s32 %s22, 1
        // Predicated region
        $region13: #{_lm_head_impl.1} parent=11 // pred_check
          %p197 = pneg %p81
        $region14: #{_lm_head_impl.1} parent=11 // pred_check_branch
          %199 = sbr.rel (%p197) target = $region16
        $region15: #{_lm_head_impl.1} parent=11 // pred_region
          _
        $region16: #{_lm_head_impl.1} parent=11 // pred_fallthru
          _
        // Predicated region
        $region17: #{_lm_head_impl.1} parent=11 // pred_check
          %p200 = pneg %p102
        $region18: #{_lm_head_impl.1} parent=11 // pred_check_branch
          %202 = sbr.rel (%p200) target = $region20
        $region19: #{_lm_head_impl.1} parent=11 // pred_region
          _
        $region20: #{_lm_head_impl.1} parent=11 // pred_fallthru
          _
        // Predicated region
        $region21: #{_lm_head_impl.1} parent=11 // pred_check
          %p203 = pneg %p128
        $region22: #{_lm_head_impl.1} parent=11 // pred_check_branch
          %205 = sbr.rel (%p203) target = $region24
        $region23: #{_lm_head_impl.1} parent=11 // pred_region
          %s206 = smul.u32 2, %s32
          %s208 = ssub.s32 512, 512
          %209 = vsyncadd [#allocation9], %s208
          %s210 = smul.addr %s206, 64
          %s211 = scalar_lea.hbm %s3, %s210
          %s212 = sshll.u32 [#allocation8], 4
          %s213 = int_to_ptr.vmem [resolvable:$true] %s212
          %218 = dma.hbm_to_vmem [thread:$0]  %s211, 512, %s213, [#allocation9], 128, 128, 8
        $region24: #{_lm_head_impl.1} parent=11 // pred_fallthru
          _
      $region12: #{_lm_head_impl.1} parent=5 // pred_fallthru
        _
      %p219 = scmp.lt.s32.totalorder %s22, 2
      // Predicated region
      $region25: #{_lm_head_impl.1} parent=5 // pred_check
        %p220 = pneg %p219
      $region26: #{_lm_head_impl.1} parent=5 // pred_check_branch
        %222 = sbr.rel (%p220) target = $region28
      $region27: #{_lm_head_impl.1} parent=5 // pred_region
        // Predicated region
        $region29: #{_lm_head_impl.1} parent=27 // pred_check
          %p223 = pneg %p54
        $region30: #{_lm_head_impl.1} parent=27 // pred_check_branch
          %225 = sbr.rel (%p223) target = $region32
        $region31: #{_lm_head_impl.1} parent=27 // pred_region
          %s226 = sand.u32 %s44, 1
          %s227 = scalar_lea.sflag [#allocation6], %s226
          %s228 = sand.u32 %s44, 1
          %s229 = smul.addr %s228, 8
          %s230 = scalar_lea.vmem [#allocation5], %s229
          %s232 = ssub.s32 128, 128
          %233 = vsyncadd %s227, %s232
          %s234 = smul.addr %s29, 128
          %s235 = scalar_lea.hbm %s0, %s234
          %s237 = sshll.u32 %s230, 4
          %s238 = int_to_ptr.vmem [resolvable:$true] %s237
          %240 = dma.hbm_to_vmem [thread:$0]  %s235, 128, %s238, %s227
        $region32: #{_lm_head_impl.1} parent=27 // pred_fallthru
          _
      $region28: #{_lm_head_impl.1} parent=5 // pred_fallthru
        _
      %p241 = scmp.le.s32.totalorder 1, %s22
      %p242 = scmp.lt.s32.totalorder %s22, 3
      %p243 = pnand %p241, %p242
      %p244 = pneg %p243
      // Predicated region
      $region33: #{_lm_head_impl.1} parent=5 // pred_check
        _
      $region34: #{_lm_head_impl.1} parent=5 // pred_check_branch
        %246 = sbr.rel (%p243) target = $region36
      $region35: #{_lm_head_impl.1} parent=5 // pred_region
        %s247 = ssub.s32 %s22, 1
        %s248 = sand.u32 %s47, 1
        %s249 = scalar_lea.sflag [#allocation6], %s248
        %s250 = sand.u32 %s47, 1
        %s251 = smul.addr %s250, 8
        %s252 = scalar_lea.vmem [#allocation5], %s251
        // Predicated region
        $region37: #{_lm_head_impl.1} parent=35 // pred_check
          %p253 = pneg %p60
        $region38: #{_lm_head_impl.1} parent=35 // pred_check_branch
          %255 = sbr.rel (%p253) target = $region40
        $region39: #{_lm_head_impl.1} parent=35 // pred_region
          %256 = dma.done %s249, 128
        $region40: #{_lm_head_impl.1} parent=35 // pred_fallthru
          _
        // Predicated region
        $region41: #{_lm_head_impl.1} parent=35 // pred_check
          %p257 = pneg %p128
        $region42: #{_lm_head_impl.1} parent=35 // pred_check_branch
          %259 = sbr.rel (%p257) target = $region44
        $region43: #{_lm_head_impl.1} parent=35 // pred_region
          %260 = dma.done [#allocation9], 512
        $region44: #{_lm_head_impl.1} parent=35 // pred_fallthru
          _
        %s261 = sand.u32 %s47, 1
        %s262 = scalar_lea.sflag [#allocation6], %s261
        %s263 = sand.u32 %s47, 1
        %s264 = smul.addr %s263, 8
        %s265 = scalar_lea.vmem [#allocation5], %s264
        %p266 = pneg %p60
        %p267 = pneg %p57
        %p268 = pneg %p81
        %p269 = pneg %p78
        %p270 = pneg %p102
        %p271 = pneg %p99
        %p272 = pneg %p128
        %p273 = pneg %p125
        %p274 = pneg %p156
        %p275 = pneg %p153
        %s276 = sand.u32 %s143, 1
        %s277 = scalar_lea.sflag [#allocation7], %s276
        %s278 = sand.u32 %s143, 1
        %s279 = smul.addr %s278, 16
        %s280 = scalar_lea.vmem [#allocation10], %s279
        %p281 = pneg %p182
        %p282 = pneg %p179
        %s283 = sand.u32 %s169, 1
        %s284 = scalar_lea.sflag [#allocation12], %s283
        %s285 = sand.u32 %s169, 1
        %s286 = smul.addr %s285, 8
        %s287 = scalar_lea.vmem [#allocation11], %s286
        %s288 = smul.u32 2, %s32
        %s289 = smul.u32 2, %s32
        %p291 = scmp.eq.s32.totalorder %s32, 0
        // Predicated region
        $region45: #{_lm_head_impl.1} parent=35 // pred_check
          %p292 = pneg %p291
        $region46: #{_lm_head_impl.1} parent=35 // pred_check_branch
          %294 = sbr.rel (%p292) target = $region48
        $region47: #{_lm_head_impl.1} parent=35 // pred_region
          %v295 = vld [vmem:[%s252] sm:$0xff]
          %vm296 = vcmask 261120
          %v297 = vsel %vm296, %v295, 0.0
          %298 = vadd.xlane.f32.xlu0 %v297
          %v299 = vpop.xlane.xlu0 %298
          %v300 = vrcp.pop 32.0
          %v301 = vmul.f32 %v299, %v300
          %v302 = vsub.f32 %v295, %v301
          %v303 = vmul.f32 %v302, %v302
          %v304 = vsel %vm296, %v303, 0.0
          %305 = vadd.xlane.f32.xlu0 %v304
          %v306 = vpop.xlane.xlu0 %305
          %v307 = vmul.f32 %v306, %v300
          %v308 = vadd.f32 %v307, 1e-05
          %v309 = vrsqrt.pop %v308
          %v310 = vmul.f32 %v302, %v309
          %v311 = vld [vmem:[%s1] sm:$0x1]
          %v313 = vlaneseq
          %v314 = vshrl.u32 %v313, 7
          %v315 = vsub.s32 0, %v314
          %v316 = vrot.slane %v311, %v315
          %v318 = vmul.f32 %v310, %v316
          %v319 = vld [vmem:[%s2] sm:$0x1]
          %v321 = vlaneseq
          %v322 = vshrl.u32 %v321, 7
          %v323 = vsub.s32 0, %v322
          %v324 = vrot.slane %v319, %v323
          %v326 = vadd.f32 %v318, %v324
          %v327 = vpack.c.bf16 %v326, %v326
          %vm328 = vcmask 257024
          %329 = vst.msk [vmem:[#allocation2] sm:$0xf] %vm328, %v327
          %vm330 = vcmask 7168
          %331 = vst.msk [vmem:[#allocation3] sm:$0xff] %vm330, -inf
          %332 = vst.msk [vmem:[#allocation4] sm:$0xff] %vm330, 0.0
        $region48: #{_lm_head_impl.1} parent=35 // pred_fallthru
          _
        %v333 = vld [vmem:[#allocation2] sm:$0xf]
        %v334 = vld [vmem:[#allocation8] sm:$0xff]
        %v335 = vld [vmem:[#allocation8 + $0x8] sm:$0xff]
        %v336 = vld [vmem:[#allocation8 + $0x10] sm:$0xff]
        %v337 = vld [vmem:[#allocation8 + $0x18] sm:$0xff]
        %v342 = vunpack.c.l.b16 %v334
        %v343 = vunpack.c.h.b16 %v334
        %v344 = vunpack.c.l.b16 %v335
        %v345 = vunpack.c.h.b16 %v335
        %v346 = vunpack.c.l.b16 %v336
        %v347 = vunpack.c.h.b16 %v336
        %v348 = vunpack.c.l.b16 %v337
        %v349 = vunpack.c.h.b16 %v337
        %v350 = vpack.c.b16 %v344, %v342
        %v351 = vpack.c.b16 %v345, %v343
        %v352 = vpack.c.b16 %v348, %v346
        %v353 = vpack.c.b16 %v349, %v347
        %vm358 = vcmask 261120
        %v360 = vsel %vm358, %v333, 0
        %362 = vmatprep.subr.bf16.mxu0 %v351
        %363 = vmatpush1.bf16.msra.mxu0 %v350
        %364 = vmatprep.subr.bf16.mxu0 %v353
        %365 = vmatpush1.bf16.msra.mxu0 %v352
        %366 = vmatprep.subr.bf16.mxu0 0
        %367 = vmatpush1.bf16.msra.mxu0 0
        %368 = vmatprep.subr.bf16.mxu0 0
        %369 = vmatpush1.bf16.msra.mxu0 0
        %370 = vmatprep.subr.bf16.mxu0 0
        %371 = vmatpush1.bf16.msra.mxu0 0
        %372 = vmatprep.subr.bf16.mxu0 0
        %373 = vmatpush1.bf16.msra.mxu0 0
        %374 = vmatprep.subr.bf16.mxu0 0
        %375 = vmatpush1.bf16.msra.mxu0 0
        %376 = vmatprep.subr.bf16.mxu0 0
        %377 = vmatpush1.bf16.msra.mxu0 0
        %378 = vmatprep.subr.bf16.mxu0 0
        %379 = vmatpush1.bf16.msra.mxu0 0
        %380 = vmatprep.subr.bf16.mxu0 0
        %381 = vmatpush1.bf16.msra.mxu0 0
        %382 = vmatprep.subr.bf16.mxu0 0
        %383 = vmatpush1.bf16.msra.mxu0 0
        %384 = vmatprep.subr.bf16.mxu0 0
        %385 = vmatpush1.bf16.msra.mxu0 0
        %386 = vmatprep.subr.bf16.mxu0 0
        %387 = vmatpush1.bf16.msra.mxu0 0
        %388 = vmatprep.subr.bf16.mxu0 0
        %389 = vmatpush1.bf16.msra.mxu0 0
        %390 = vmatprep.subr.bf16.mxu0 0
        %391 = vmatpush1.bf16.msra.mxu0 0
        %392 = vmatprep.subr.bf16.mxu0 0
        %393 = vmatpush1.bf16.msra.mxu0 0
        %394 = vmatprep.mubr.bf16.mxu0 0
        %395 = vmatmul.mubr.bf16.gmra.mrb[0].mxu0 %v360
        %v396 = vpop.f32.mrb[0].mxu0
        %v397 = vadd.f32 0.0, %v396
        %v398 = vpop.f32.mrb[0].mxu0
        %v399 = vadd.f32 0.0, %v398
        %v400 = vpop.f32.mrb[0].mxu0
        %v401 = vpop.f32.mrb[0].mxu0
        %402 = vdwg.mxu0
        %v403 = vld [vmem:[#allocation3] sm:$0xff]
        %v404 = vmax.f32 %v397, %v399
        %405 = vmax.xlane.f32.xlu0 %v404
        %v406 = vpop.xlane.xlu0 %405
        %v407 = vmax.f32 %v403, %v406
        %v408 = vld [vmem:[#allocation4] sm:$0xff]
        %v409 = vsub.f32 %v403, %v407
        %v410 = vmul.f32 %v409, 1.442695
        %v411 = vpow.pop %v410
        %v412 = vmul.f32 %v408, %v411
        %414 = vset.pattern.permute.xlu0 0
        %415 = vperm.xlu0 %414, %v407
        %v416 = vpop.permute.xlu0 %415
        %v418 = vsub.f32 %v397, %v416
        %v419 = vsub.f32 %v399, %v416
        %v420 = vmul.f32 %v418, 1.442695
        %v421 = vpow.pop %v420
        %v422 = vmul.f32 %v419, 1.442695
        %v423 = vpow.pop %v422
        %v424 = vadd.f32 %v421, %v423
        %425 = vadd.xlane.f32.xlu0 %v424
        %v426 = vpop.xlane.xlu0 %425
        %v427 = vadd.f32 %v412, %v426
        %vm428 = vcmask 7168
        %429 = vst.msk [vmem:[#allocation4] sm:$0xff] %vm428, %v427
        %430 = vst.msk [vmem:[#allocation3] sm:$0xff] %vm428, %v407
        %v431 = vld [vmem:[#allocation4] sm:$0xff]
        %v432 = vlog2.pop %v431
        %v433 = vmul.f32 %v432, 0.6931472
        %v434 = vadd.f32 %v407, %v433
        %436 = vset.pattern.permute.xlu0 0
        %437 = vperm.xlu0 %436, %v434
        %v438 = vpop.permute.xlu0 %437
        %v440 = vsub.f32 %v397, %v438
        %v441 = vsub.f32 %v399, %v438
        %442 = vst [vmem:[%s280] sm:$0xff] %v440
        %443 = vst [vmem:[%s280 + $0x8] sm:$0xff] %v441
        %444 = vst.msk [vmem:[%s287] sm:$0xff] %vm428, %v434
        %s445 = sand.u32 %s143, 1
        %s446 = scalar_lea.sflag [#allocation7], %s445
        %s447 = sand.u32 %s143, 1
        %s448 = smul.addr %s447, 16
        %s449 = scalar_lea.vmem [#allocation10], %s448
        %s450 = sand.u32 %s169, 1
        %s451 = scalar_lea.sflag [#allocation12], %s450
        %s452 = sand.u32 %s169, 1
        %s453 = smul.addr %s452, 8
        %s454 = scalar_lea.vmem [#allocation11], %s453
        // Predicated region
        $region49: #{_lm_head_impl.1} parent=35 // pred_check
          %p455 = pneg %p153
        $region50: #{_lm_head_impl.1} parent=35 // pred_check_branch
          %457 = sbr.rel (%p455) target = $region52
        $region51: #{_lm_head_impl.1} parent=35 // pred_region
          %s458 = smul.u32 2, %s32
          %s460 = ssub.s32 256, 256
          %461 = vsyncadd %s446, %s460
          %s462 = smul.addr %s31, 2
          %s463 = sadd.s32 %s458, %s462
          %s464 = smul.addr %s463, 128
          %s465 = scalar_lea.hbm %s4, %s464
          %s467 = sshll.u32 %s449, 4
          %s468 = int_to_ptr.vmem [resolvable:$true] %s467
          %470 = dma.vmem_to_hbm [thread:$0]  %s468, 256, %s465, %s446
        $region52: #{_lm_head_impl.1} parent=35 // pred_fallthru
          _
        // Predicated region
        $region53: #{_lm_head_impl.1} parent=35 // pred_check
          %p471 = pneg %p179
        $region54: #{_lm_head_impl.1} parent=35 // pred_check_branch
          %473 = sbr.rel (%p471) target = $region56
        $region55: #{_lm_head_impl.1} parent=35 // pred_region
          %s475 = ssub.s32 128, 128
          %476 = vsyncadd %s451, %s475
          %s477 = smul.addr %s31, 128
          %s478 = scalar_lea.hbm %s5, %s477
          %s480 = sshll.u32 %s454, 4
          %s481 = int_to_ptr.vmem [resolvable:$true] %s480
          %483 = dma.vmem_to_hbm [thread:$0]  %s481, 128, %s478, %s451
        $region56: #{_lm_head_impl.1} parent=35 // pred_fallthru
          _
      $region36: #{_lm_head_impl.1} parent=5 // pred_fallthru
        _
      %p484 = scmp.le.s32.totalorder 2, %s22
      // Predicated region
      $region57: #{_lm_head_impl.1} parent=5 // pred_check
        %p485 = pneg %p484
      $region58: #{_lm_head_impl.1} parent=5 // pred_check_branch
        %487 = sbr.rel (%p485) target = $region60
      $region59: #{_lm_head_impl.1} parent=5 // pred_region
        %s488 = ssub.s32 %s22, 2
        // Predicated region
        $region61: #{_lm_head_impl.1} parent=59 // pred_check
          %p489 = pneg %p159
        $region62: #{_lm_head_impl.1} parent=59 // pred_check_branch
          %491 = sbr.rel (%p489) target = $region64
        $region63: #{_lm_head_impl.1} parent=59 // pred_region
          %s492 = sand.u32 %s144, 1
          %s493 = scalar_lea.sflag [#allocation7], %s492
          %s494 = sand.u32 %s144, 1
          %s495 = smul.addr %s494, 16
          %s496 = scalar_lea.vmem [#allocation10], %s495
          %497 = dma.done %s493, 256
        $region64: #{_lm_head_impl.1} parent=59 // pred_fallthru
          _
        // Predicated region
        $region65: #{_lm_head_impl.1} parent=59 // pred_check
          %p498 = pneg %p185
        $region66: #{_lm_head_impl.1} parent=59 // pred_check_branch
          %500 = sbr.rel (%p498) target = $region68
        $region67: #{_lm_head_impl.1} parent=59 // pred_region
          %s501 = sand.u32 %s170, 1
          %s502 = scalar_lea.sflag [#allocation12], %s501
          %s503 = sand.u32 %s170, 1
          %s504 = smul.addr %s503, 8
          %s505 = scalar_lea.vmem [#allocation11], %s504
          %506 = dma.done %s502, 128
        $region68: #{_lm_head_impl.1} parent=59 // pred_fallthru
          _
      $region60: #{_lm_head_impl.1} parent=5 // pred_fallthru
        _
    $region6: #{_lm_head_impl.1} parent=1 // loop_footer
      %s26 = sadd.s32 1, %s22
    $region7: #{_lm_head_impl.1} parent=1 // loop_footer_branch
      %21 = sbr.rel target = $region3
    $region8: #{_lm_head_impl.1} parent=1 // loop_exit
      _
    %507 = vsyncpa [#allocation6], 1
    %s508 = scalar_lea.sflag [#allocation6], 1
    %509 = vsyncpa %s508, 1
    %510 = vsyncpa [#allocation9], 1
    %511 = vsyncpa [#allocation7], 1
    %s512 = scalar_lea.sflag [#allocation7], 1
    %513 = vsyncpa %s512, 1
    %514 = vsyncpa [#allocation12], 1
    %s515 = scalar_lea.sflag [#allocation12], 1
    %516 = vsyncpa %s515, 1

</llo_original>
